<compile_context>
chip_gen: v6e
topology: v6e:2x2x1
jax: 0.10.0
libtpu: 0.0.40
codegen_flags: <defaults>
</compile_context>

<pallas_src>
import math

import jax
import jax.numpy as jnp
from jax import lax
from jax.experimental import pallas as pl
from jax.experimental.pallas import tpu as pltpu


def _mixed_matmul_kernel(w_ref, b_ref, p_ref, o_ref):
    # w_ref: (Cout, Kp) bf16   combined/folded conv weight (transposed, lane-dense)
    # b_ref: (Cout, 1)  f32    combined bias
    # p_ref: (1, Kp, TM) bf16  im2col patches^T tile (lanes = spatial positions)
    # o_ref: (1, Cout, TM) f32 lane-dense output tile
    acc = jnp.dot(w_ref[...], p_ref[0], preferred_element_type=jnp.float32)
    o_ref[0] = (acc + b_ref[...]).astype(o_ref.dtype)


def mixed_results_forward(x_nchw, weights, biases, alpha, kd, temp=1.0):
    # TODO(synk): get_weight() is not defined in the reference source; assuming
    # coef = softmax(alpha / temp) (uniform coefficients for alpha == 0, as in __init__).
    coef = jax.nn.softmax(alpha / temp).astype(jnp.float32)

    N, Cin, H, W = x_nchw.shape
    Cout = biases.shape[1]

    # Per-branch (kernel, dilation, PyTorch floor padding) and the global halo P.
    conv_cfgs = []
    P = 0
    for ks, ds in kd:
        pads = tuple(d * (k - 1) // 2 for k, d in zip(ks, ds))
        conv_cfgs.append((tuple(ks), tuple(ds), pads))
        for k, d in zip(ks, ds):
            P = max(P, -(-(d * (k - 1)) // 2))   # ceil(d*(k-1)/2): global halo
    KH = KW = 2 * P + 1

    # ---- Fold softmax coefficients + biases into one combined conv (exact, f32). ----
    w_eff = jnp.zeros((KH, KW, Cin, Cout), jnp.float32)
    for i, ((kh, kw), (dh, dw), (ph, pw)) in enumerate(conv_cfgs):
        wi = weights[i].astype(jnp.float32)
        for a in range(kh):
            for b in range(kw):
                u = P - ph + a * dh
                v = P - pw + b * dw
                w_eff = w_eff.at[u, v].add(coef[i] * wi[a, b])
    b_eff = (coef @ biases.astype(jnp.float32)).reshape(Cout, 1)       # (Cout, 1)

    K = KH * KW * Cin
    Kp = ((K + 127) // 128) * 128        # pad contraction dim to a multiple of 128
    w_flat = jnp.pad(w_eff.reshape(K, Cout), ((0, Kp - K), (0, 0)))
    w_t = jnp.transpose(w_flat).astype(jnp.bfloat16)                   # (Cout, Kp)

    # ---- Wrapper-side im2col: lane-dense patches^T (N, Kp, H*W), bf16. ----
    # NCHW is already channel-major, so every tap window is a static slice.
    xpad = jnp.pad(x_nchw.astype(jnp.bfloat16), ((0, 0), (0, 0), (P, P), (P, P)))
    M = H * W
    taps = []
    for u in range(KH):
        for v in range(KW):
            taps.append(xpad[:, :, u:u + H, v:v + W].reshape(N, Cin, M))
    patches_t = jnp.stack(taps, axis=1).reshape(N, K, M)   # row index = tap*Cin + ci
    patches_t = jnp.pad(patches_t, ((0, 0), (0, Kp - K), (0, 0)))

    # ---- Spatial (lane) tiling of H*W; TM is a multiple of 128 or the full extent. ----
    TM = M
    for cand in (2048, 1024, 512, 256, 128):
        if M % cand == 0:
            TM = cand
            break
    num_m = M // TM

    out_t = pl.pallas_call(
        _mixed_matmul_kernel,
        out_shape=jax.ShapeDtypeStruct((N, Cout, M), jnp.float32),
        grid=(N, num_m),
        in_specs=[
            pl.BlockSpec((Cout, Kp), lambda n, m: (0, 0)),      # folded weight (shared)
            pl.BlockSpec((Cout, 1), lambda n, m: (0, 0)),       # folded bias (shared)
            pl.BlockSpec((1, Kp, TM), lambda n, m: (n, 0, m)),  # patches^T tile
        ],
        out_specs=pl.BlockSpec((1, Cout, TM), lambda n, m: (n, 0, m)),
        compiler_params=pltpu.CompilerParams(
            dimension_semantics=("parallel", "parallel")),
    )(w_t, b_eff, patches_t)

    return out_t.reshape(N, Cout, H, W)     # already NCHW: no trailing transpose


def reference_forward(x_nchw, weights, biases, alpha, kd, temp=1.0):
    """Pure-JAX f32 reference (lax conv) used only for verification."""
    coef = jax.nn.softmax(alpha / temp)
    x = jnp.transpose(x_nchw, (0, 2, 3, 1)).astype(jnp.float32)
    out = None
    for i, (ks, ds) in enumerate(kd):
        pads = [(d * (k - 1) // 2, d * (k - 1) // 2) for k, d in zip(ks, ds)]
        y = lax.conv_general_dilated(
            x, weights[i].astype(jnp.float32), window_strides=(1, 1), padding=pads,
            rhs_dilation=tuple(ds),
            dimension_numbers=("NHWC", "HWIO", "NHWC")) + biases[i]
        out = coef[i] * y if out is None else out + coef[i] * y
    return jnp.transpose(out, (0, 3, 1, 2))


if __name__ == "__main__":
    key = jax.random.PRNGKey(0)
    N, Cin, H, W = 2, 4, 16, 16
    Cout = 8
    kernel_sizes = [(3, 3), (5, 5)]
    dilations = [1]
    # mirrors self.kd = product(kernel_sizes, [int2tuple(d, length=2) for d in dilations])
    kd = [(ks, (d, d)) for ks in kernel_sizes for d in dilations]

    keys = jax.random.split(key, 1 + 2 * len(kd))
    x = jax.random.normal(keys[0], (N, Cin, H, W), dtype=jnp.float32)

    weights, bias_list = [], []
    for i, (ks, ds) in enumerate(kd):
        kh, kw = ks
        bound = 1.0 / math.sqrt(Cin * kh * kw)   # PyTorch Conv2d default init range
        w = jax.random.uniform(keys[1 + 2 * i], (kh, kw, Cin, Cout),
                               minval=-bound, maxval=bound, dtype=jnp.float32)
        b = jax.random.uniform(keys[2 + 2 * i], (Cout,),
                               minval=-bound, maxval=bound, dtype=jnp.float32)
        weights.append(w)
        bias_list.append(b)
    biases = jnp.stack(bias_list)                 # (n_convs, Cout)
    alpha = jnp.zeros((len(kd),), jnp.float32)    # nn.Parameter(torch.zeros(len(kd)))

    out = mixed_results_forward(x, weights, biases, alpha, kd, temp=1.0)
    out = jax.block_until_ready(out)

    ref = reference_forward(x, weights, biases, alpha, kd, temp=1.0)
    assert out.shape == (N, Cout, H, W), out.shape
    # Tolerance reflects bf16 MXU inputs (f32 accumulation) vs. the pure-f32 reference.
    assert jnp.allclose(out, ref, atol=5e-2, rtol=5e-2), float(jnp.max(jnp.abs(out - ref)))
    print("KERNEL_OK")
</pallas_src>

<mosaic_0001>
module attributes {stable_mosaic.version = 11 : i64} {
  func.func @_mixed_matmul_kernel(%arg0: i32, %arg1: i32, %arg2: memref<8x128xbf16, #tpu.memory_space<vmem>>, %arg3: memref<8x1xf32, #tpu.memory_space<vmem>>, %arg4: memref<1x128x256xbf16, #tpu.memory_space<vmem>>, %arg5: memref<1x8x256xf32, #tpu.memory_space<vmem>>) attributes {dimension_semantics = [#tpu.dimension_semantics<parallel>, #tpu.dimension_semantics<parallel>], iteration_bounds = array<i64: 2, 1>, scalar_prefetch = 0 : i64, scratch_operands = 0 : i64, tpu.core_type = #tpu.core_type<tc>, window_params = [{pipeline_mode = #tpu.pipeline_mode<synchronous>, transform_indices = @transform_0, window_bounds = array<i64: 8, 128>}, {pipeline_mode = #tpu.pipeline_mode<synchronous>, transform_indices = @transform_1, window_bounds = array<i64: 8, 1>}, {transform_indices = @transform_2, window_bounds = array<i64: 1, 128, 256>}, {transform_indices = @transform_3, window_bounds = array<i64: 1, 8, 256>}]} {
    %c0 = arith.constant 0 : index
    %c0_0 = arith.constant 0 : index
    %0 = vector.load %arg2[%c0, %c0_0] : memref<8x128xbf16, #tpu.memory_space<vmem>>, vector<8x128xbf16>
    %c0_1 = arith.constant 0 : index
    %c0_2 = arith.constant 0 : index
    %c0_3 = arith.constant 0 : index
    %1 = vector.load %arg4[%c0_1, %c0_2, %c0_3] : memref<1x128x256xbf16, #tpu.memory_space<vmem>>, vector<1x128x256xbf16>
    %2 = vector.shape_cast %1 : vector<1x128x256xbf16> to vector<128x256xbf16>
    %cst = arith.constant dense<0.000000e+00> : vector<8x256xf32>
    %3 = tpu.matmul %0, %2, %cst {dimension_numbers = #tpu.dot_dimension_numbers<[1], [0], [0], [1], [0, 0, 1, 1], [], []>} : vector<8x128xbf16>, vector<128x256xbf16>, vector<8x256xf32> -> vector<8x256xf32>
    %c0_4 = arith.constant 0 : index
    %c0_5 = arith.constant 0 : index
    %4 = vector.load %arg3[%c0_4, %c0_5] : memref<8x1xf32, #tpu.memory_space<vmem>>, vector<8x1xf32>
    %5 = vector.broadcast %4 : vector<8x1xf32> to vector<8x256xf32>
    %6 = arith.addf %3, %5 : vector<8x256xf32>
    %c0_6 = arith.constant 0 : index
    %c0_7 = arith.constant 0 : index
    %c0_8 = arith.constant 0 : index
    %7 = vector.load %arg5[%c0_6, %c0_7, %c0_8] : memref<1x8x256xf32, #tpu.memory_space<vmem>>, vector<1x8x256xf32>
    %8 = vector.shape_cast %7 : vector<1x8x256xf32> to vector<8x256xf32>
    %9 = vector.shape_cast %6 : vector<8x256xf32> to vector<1x8x256xf32>
    tpu.vector_store %arg5[%c0_6, %c0_7, %c0_8], %9 {strides = array<i32>} : memref<1x8x256xf32, #tpu.memory_space<vmem>>, vector<1x8x256xf32>,
    return
  }
  func.func @transform_0(%arg0: i32, %arg1: i32) -> (i32, i32) {
    %c0_i32 = arith.constant 0 : i32
    %c0_i32_0 = arith.constant 0 : i32
    %c0_i32_1 = arith.constant 0 : i32
    return %c0_i32, %c0_i32_0 : i32, i32
  }
  func.func @transform_1(%arg0: i32, %arg1: i32) -> (i32, i32) {
    %c0_i32 = arith.constant 0 : i32
    %c0_i32_0 = arith.constant 0 : i32
    %c0_i32_1 = arith.constant 0 : i32
    return %c0_i32, %c0_i32_0 : i32, i32
  }
  func.func @transform_2(%arg0: i32, %arg1: i32) -> (i32, i32, i32) {
    %c0_i32 = arith.constant 0 : i32
    %c0_i32_0 = arith.constant 0 : i32
    return %arg0, %c0_i32, %arg1 : i32, i32, i32
  }
  func.func @transform_3(%arg0: i32, %arg1: i32) -> (i32, i32, i32) {
    %c0_i32 = arith.constant 0 : i32
    %c0_i32_0 = arith.constant 0 : i32
    return %arg0, %c0_i32, %arg1 : i32, i32, i32
  }
}

</mosaic_0001>

<llo_original>
// kernel: tpu_custom_call.1
$region0: #{tpu_custom_call.1}
  #allocation0 [shape = 'u32[]', space=smem, size = 0x4, offset = 0x4, fixed_abs, tag = 'smem constant byte address 0x4 - core index']
  #allocation1 [shape = 'u32[144,128]{1,0:T(1,128)}', space=vmem, size = 0x12000, scoped, tag = 'internal scratch']
  %s0 = inlined_call_operand.vmem [shape: bf16[8,128], index: 0, kind: input, shape index: {}]
  %s1 = inlined_call_operand.vmem [shape: f32[8,1], index: 1, kind: input, shape index: {}]
  %s2 = inlined_call_operand.hbm [shape: bf16[2,128,256], index: 2, kind: input, shape index: {}]
  %s3 = inlined_call_operand.hbm [shape: f32[2,8,256], index: 3, kind: output, shape index: {}]
  %s4 = sld [smem:[#allocation0]]
  $region49: #{tpu_custom_call.1} parent=0
    _
  %s6 = ssub.s32 1, %s4
  %s7 = scalar_select 0, %s6, %s4
  $region1: #{tpu_custom_call.1} parent=0
    #allocation2 [shape = 'u8[131072]{0}', space=vmem, size = 0x20000, scoped, tag = 'input window, operand 2']
    #allocation3 [shape = 's32[2]{0}', space=sflag, size = 0x8, scoped, tag = 'scoped memory for tpu_custom_call.1']
    #allocation4 [shape = 's32[2]{0}', space=sflag, size = 0x8, scoped, tag = 'scoped memory for tpu_custom_call.1']
    #allocation5 [shape = 'u8[16384]{0}', space=vmem, size = 0x4000, scoped, tag = 'output window, operand 0']
    %8 = vsyncpa [#allocation3], 0
    %s9 = scalar_lea.sflag [#allocation3], 1
    %10 = vsyncpa %s9, 0
    %11 = vsyncpa [#allocation4], 0
    %s12 = scalar_lea.sflag [#allocation4], 1
    %13 = vsyncpa %s12, 0
    loop: start=0, step=1, limit=4
    $region2: #{tpu_custom_call.1} parent=1 // loop_pre_header
      _
    $region3: #{tpu_custom_call.1} parent=1 // loop_header
      %s15 = sphi 0, %s19
      %p16 = scmp.ge.s32.totalorder %s15, 4
      %s22 = sphi 0, %s34
      %s23 = sphi 0, %s30
      %s24 = sphi 0, %s22
      %s25 = sphi 0, %s23
      %s26 = sphi 0, %s24
      %s27 = sphi 0, %s25
      %s35 = sphi 0, %s35
      %s37 = sphi 0, %s35
      %s38 = sphi 0, %s37
      %s52 = sphi 0, %s38
      %s56 = sphi 0, %s56
      %s58 = sphi 0, %s56
      %s59 = sphi 0, %s58
      %s73 = sphi 0, %s59
      %s81 = sphi 0, %s83
      %s84 = sphi 0, %s81
      %s85 = sphi 0, %s84
      %s101 = sphi 0, %s85
      %s109 = sphi 0, %s111
      %s112 = sphi 0, %s109
      %s113 = sphi 0, %s112
      %s129 = sphi 0, %s113
    $region4: #{tpu_custom_call.1} parent=1 // loop_header_branch
      %18 = sbr.rel (%p16) target = $region8
    $region5: #{tpu_custom_call.1} parent=1 // loop_body
      %s20 = ssub.s32 %s15, 1
      %s21 = ssub.s32 %s15, 2
      %s28 = sadd.s32 1, %s23
      %p29 = scmp.ge.s32.totalorder %s28, 1
      %s30 = scalar_select %p29, 0, %s28
      %s31 = sadd.s32 1, %s22
      %s32 = scalar_select %p29, %s31, %s22
      %p33 = scmp.ge.s32.totalorder %s32, 2
      %s34 = scalar_select %p33, 0, %s32
      %s36 = sadd.s32 %s35, 1
      %p39 = scmp.eq.s32.totalorder %s15, 1
      %p40 = scmp.ne.s32.totalorder %s35, %s37
      %p41 = scmp.eq.s32.totalorder %s15, 0
      %p42 = por %p40, %p41
      %p43 = scmp.ne.s32.totalorder %s35, %s37
      %p44 = scmp.eq.s32.totalorder %s20, 1
      %p45 = por %p43, %p44
      %p46 = scmp.ne.s32.totalorder %s37, %s38
      %p47 = scmp.eq.s32.totalorder %s20, 0
      %p48 = por %p46, %p47
      %p49 = scmp.ne.s32.totalorder %s37, %s38
      %p50 = scmp.eq.s32.totalorder %s21, 1
      %p51 = por %p49, %p50
      %p53 = scmp.ne.s32.totalorder %s38, %s52
      %p54 = scmp.eq.s32.totalorder %s21, 0
      %p55 = por %p53, %p54
      %s57 = sadd.s32 %s56, 1
      %p60 = scmp.eq.s32.totalorder %s15, 1
      %p61 = scmp.ne.s32.totalorder %s56, %s58
      %p62 = scmp.eq.s32.totalorder %s15, 0
      %p63 = por %p61, %p62
      %p64 = scmp.ne.s32.totalorder %s56, %s58
      %p65 = scmp.eq.s32.totalorder %s20, 1
      %p66 = por %p64, %p65
      %p67 = scmp.ne.s32.totalorder %s58, %s59
      %p68 = scmp.eq.s32.totalorder %s20, 0
      %p69 = por %p67, %p68
      %p70 = scmp.ne.s32.totalorder %s58, %s59
      %p71 = scmp.eq.s32.totalorder %s21, 1
      %p72 = por %p70, %p71
      %p74 = scmp.ne.s32.totalorder %s59, %s73
      %p75 = scmp.eq.s32.totalorder %s21, 0
      %p76 = por %p74, %p75
      %s77 = ssub.s32 %s22, %s34
      %s78 = ssub.s32 %s23, %s30
      %s79 = sor.u32 %s77, %s78
      %p80 = scmp.eq.s32.totalorder %s79, 0
      %s82 = sadd.s32 %s81, 1
      %s83 = scalar_select %p80, %s81, %s82
      %p86 = pneg %p80
      %p87 = scmp.eq.s32.totalorder %s15, 1
      %p88 = por %p86, %p87
      %p89 = scmp.ne.s32.totalorder %s81, %s84
      %p90 = scmp.eq.s32.totalorder %s15, 0
      %p91 = por %p89, %p90
      %p92 = scmp.ne.s32.totalorder %s81, %s84
      %p93 = scmp.eq.s32.totalorder %s20, 1
      %p94 = por %p92, %p93
      %p95 = scmp.ne.s32.totalorder %s84, %s85
      %p96 = scmp.eq.s32.totalorder %s20, 0
      %p97 = por %p95, %p96
      %p98 = scmp.ne.s32.totalorder %s84, %s85
      %p99 = scmp.eq.s32.totalorder %s21, 1
      %p100 = por %p98, %p99
      %p102 = scmp.ne.s32.totalorder %s85, %s101
      %p103 = scmp.eq.s32.totalorder %s21, 0
      %p104 = por %p102, %p103
      %s105 = ssub.s32 %s22, %s34
      %s106 = ssub.s32 %s23, %s30
      %s107 = sor.u32 %s105, %s106
      %p108 = scmp.eq.s32.totalorder %s107, 0
      %s110 = sadd.s32 %s109, 1
      %s111 = scalar_select %p108, %s109, %s110
      %p114 = pneg %p108
      %p115 = scmp.eq.s32.totalorder %s15, 1
      %p116 = por %p114, %p115
      %p117 = scmp.ne.s32.totalorder %s109, %s112
      %p118 = scmp.eq.s32.totalorder %s15, 0
      %p119 = por %p117, %p118
      %p120 = scmp.ne.s32.totalorder %s109, %s112
      %p121 = scmp.eq.s32.totalorder %s20, 1
      %p122 = por %p120, %p121
      %p123 = scmp.ne.s32.totalorder %s112, %s113
      %p124 = scmp.eq.s32.totalorder %s20, 0
      %p125 = por %p123, %p124
      %p126 = scmp.ne.s32.totalorder %s112, %s113
      %p127 = scmp.eq.s32.totalorder %s21, 1
      %p128 = por %p126, %p127
      %p130 = scmp.ne.s32.totalorder %s113, %s129
      %p131 = scmp.eq.s32.totalorder %s21, 0
      %p132 = por %p130, %p131
      %p133 = scmp.le.s32.totalorder 1, %s15
      %p134 = scmp.lt.s32.totalorder %s15, 3
      %p135 = pnand %p133, %p134
      %p136 = pneg %p135
      // Predicated region
      $region9: #{tpu_custom_call.1} parent=5 // pred_check
        _
      $region10: #{tpu_custom_call.1} parent=5 // pred_check_branch
        %138 = sbr.rel (%p135) target = $region12
      $region11: #{tpu_custom_call.1} parent=5 // pred_region
        %s139 = ssub.s32 %s15, 1
        // Predicated region
        $region13: #{tpu_custom_call.1} parent=11 // pred_check
          %p140 = pneg %p48
        $region14: #{tpu_custom_call.1} parent=11 // pred_check_branch
          %142 = sbr.rel (%p140) target = $region16
        $region15: #{tpu_custom_call.1} parent=11 // pred_region
          _
        $region16: #{tpu_custom_call.1} parent=11 // pred_fallthru
          _
        // Predicated region
        $region17: #{tpu_custom_call.1} parent=11 // pred_check
          %p143 = pneg %p69
        $region18: #{tpu_custom_call.1} parent=11 // pred_check_branch
          %145 = sbr.rel (%p143) target = $region20
        $region19: #{tpu_custom_call.1} parent=11 // pred_region
          _
        $region20: #{tpu_custom_call.1} parent=11 // pred_fallthru
          _
      $region12: #{tpu_custom_call.1} parent=5 // pred_fallthru
        _
      %p146 = scmp.lt.s32.totalorder %s15, 2
      // Predicated region
      $region21: #{tpu_custom_call.1} parent=5 // pred_check
        %p147 = pneg %p146
      $region22: #{tpu_custom_call.1} parent=5 // pred_check_branch
        %149 = sbr.rel (%p147) target = $region24
      $region23: #{tpu_custom_call.1} parent=5 // pred_region
        // Predicated region
        $region25: #{tpu_custom_call.1} parent=23 // pred_check
          %p150 = pneg %p91
        $region26: #{tpu_custom_call.1} parent=23 // pred_check_branch
          %152 = sbr.rel (%p150) target = $region28
        $region27: #{tpu_custom_call.1} parent=23 // pred_region
          %s153 = sand.u32 %s81, 1
          %s154 = scalar_lea.sflag [#allocation3], %s153
          %s155 = sand.u32 %s81, 1
          %s156 = smul.addr %s155, 128
          %s157 = scalar_lea.vmem [#allocation2], %s156
          %s158 = smul.u32 2, %s23
          %s160 = ssub.s32 2048, 2048
          %161 = vsyncadd %s154, %s160
          %s162 = smul.addr %s22, 32
          %s163 = sadd.s32 %s158, %s162
          %s164 = smul.addr %s163, 64
          %s165 = scalar_lea.hbm %s2, %s164
          %s166 = sshll.u32 %s157, 4
          %s167 = int_to_ptr.vmem [resolvable:$true] %s166
          %172 = dma.hbm_to_vmem [thread:$0]  %s165, 2048, %s167, %s154, 128, 128, 8
        $region28: #{tpu_custom_call.1} parent=23 // pred_fallthru
          _
      $region24: #{tpu_custom_call.1} parent=5 // pred_fallthru
        _
      %p173 = scmp.le.s32.totalorder 1, %s15
      %p174 = scmp.lt.s32.totalorder %s15, 3
      %p175 = pnand %p173, %p174
      %p176 = pneg %p175
      // Predicated region
      $region29: #{tpu_custom_call.1} parent=5 // pred_check
        _
      $region30: #{tpu_custom_call.1} parent=5 // pred_check_branch
        %178 = sbr.rel (%p175) target = $region32
      $region31: #{tpu_custom_call.1} parent=5 // pred_region
        %s179 = ssub.s32 %s15, 1
        %s180 = sand.u32 %s84, 1
        %s181 = scalar_lea.sflag [#allocation3], %s180
        %s182 = sand.u32 %s84, 1
        %s183 = smul.addr %s182, 128
        %s184 = scalar_lea.vmem [#allocation2], %s183
        // Predicated region
        $region33: #{tpu_custom_call.1} parent=31 // pred_check
          %p185 = pneg %p97
        $region34: #{tpu_custom_call.1} parent=31 // pred_check_branch
          %187 = sbr.rel (%p185) target = $region36
        $region35: #{tpu_custom_call.1} parent=31 // pred_region
          %188 = dma.done %s181, 2048
        $region36: #{tpu_custom_call.1} parent=31 // pred_fallthru
          _
        %p189 = pneg %p48
        %p190 = pneg %p45
        %p191 = pneg %p69
        %p192 = pneg %p66
        %s193 = sand.u32 %s84, 1
        %s194 = scalar_lea.sflag [#allocation3], %s193
        %s195 = sand.u32 %s84, 1
        %s196 = smul.addr %s195, 128
        %s197 = scalar_lea.vmem [#allocation2], %s196
        %p198 = pneg %p97
        %p199 = pneg %p94
        %p200 = pneg %p125
        %p201 = pneg %p122
        %s202 = sand.u32 %s112, 1
        %s203 = scalar_lea.sflag [#allocation4], %s202
        %s204 = sand.u32 %s112, 1
        %s205 = smul.addr %s204, 16
        %s206 = scalar_lea.vmem [#allocation5], %s205
        %s207 = smul.u32 2, %s25
        %s208 = smul.u32 2, %s25
        %v210 = vld [vmem:[%s0] sm:$0xf]
        %v211 = vld [vmem:[%s184] sm:$0xff]
        %v212 = vld [vmem:[%s184 + $0x8] sm:$0xff]
        %v213 = vld [vmem:[%s184 + $0x10] sm:$0xff]
        %v214 = vld [vmem:[%s184 + $0x18] sm:$0xff]
        %v215 = vld [vmem:[%s184 + $0x20] sm:$0xff]
        %v216 = vld [vmem:[%s184 + $0x28] sm:$0xff]
        %v217 = vld [vmem:[%s184 + $0x30] sm:$0xff]
        %v218 = vld [vmem:[%s184 + $0x38] sm:$0xff]
        %v219 = vld [vmem:[%s184 + $0x40] sm:$0xff]
        %v220 = vld [vmem:[%s184 + $0x48] sm:$0xff]
        %v221 = vld [vmem:[%s184 + $0x50] sm:$0xff]
        %v222 = vld [vmem:[%s184 + $0x58] sm:$0xff]
        %v223 = vld [vmem:[%s184 + $0x60] sm:$0xff]
        %v224 = vld [vmem:[%s184 + $0x68] sm:$0xff]
        %v225 = vld [vmem:[%s184 + $0x70] sm:$0xff]
        %v226 = vld [vmem:[%s184 + $0x78] sm:$0xff]
        %v227 = vld [vmem:[%s1] sm:$0xff]
        %229 = vset.pattern.permute.xlu0 0
        %230 = vperm.xlu0 %229, %v227
        %v231 = vpop.permute.xlu0 %230
        %v249 = vunpack.c.l.b16 %v211
        %v250 = vunpack.c.h.b16 %v211
        %v251 = vunpack.c.l.b16 %v212
        %v252 = vunpack.c.h.b16 %v212
        %v253 = vunpack.c.l.b16 %v213
        %v254 = vunpack.c.h.b16 %v213
        %v255 = vunpack.c.l.b16 %v214
        %v256 = vunpack.c.h.b16 %v214
        %v257 = vunpack.c.l.b16 %v215
        %v258 = vunpack.c.h.b16 %v215
        %v259 = vunpack.c.l.b16 %v216
        %v260 = vunpack.c.h.b16 %v216
        %v261 = vunpack.c.l.b16 %v217
        %v262 = vunpack.c.h.b16 %v217
        %v263 = vunpack.c.l.b16 %v218
        %v264 = vunpack.c.h.b16 %v218
        %v265 = vunpack.c.l.b16 %v219
        %v266 = vunpack.c.h.b16 %v219
        %v267 = vunpack.c.l.b16 %v220
        %v268 = vunpack.c.h.b16 %v220
        %v269 = vunpack.c.l.b16 %v221
        %v270 = vunpack.c.h.b16 %v221
        %v271 = vunpack.c.l.b16 %v222
        %v272 = vunpack.c.h.b16 %v222
        %v273 = vunpack.c.l.b16 %v223
        %v274 = vunpack.c.h.b16 %v223
        %v275 = vunpack.c.l.b16 %v224
        %v276 = vunpack.c.h.b16 %v224
        %v277 = vunpack.c.l.b16 %v225
        %v278 = vunpack.c.h.b16 %v225
        %v279 = vunpack.c.l.b16 %v226
        %v280 = vunpack.c.h.b16 %v226
        %v281 = vpack.c.b16 %v251, %v249
        %v282 = vpack.c.b16 %v252, %v250
        %v283 = vpack.c.b16 %v255, %v253
        %v284 = vpack.c.b16 %v256, %v254
        %v285 = vpack.c.b16 %v259, %v257
        %v286 = vpack.c.b16 %v260, %v258
        %v287 = vpack.c.b16 %v263, %v261
        %v288 = vpack.c.b16 %v264, %v262
        %v289 = vpack.c.b16 %v267, %v265
        %v290 = vpack.c.b16 %v268, %v266
        %v291 = vpack.c.b16 %v271, %v269
        %v292 = vpack.c.b16 %v272, %v270
        %v293 = vpack.c.b16 %v275, %v273
        %v294 = vpack.c.b16 %v276, %v274
        %v295 = vpack.c.b16 %v279, %v277
        %v296 = vpack.c.b16 %v280, %v278
        %313 = vmatprep.subr.bf16.mxu0 %v296
        %314 = vmatpush1.bf16.msra.mxu0 %v295
        %315 = vmatprep.subr.bf16.mxu0 %v294
        %316 = vmatpush1.bf16.msra.mxu0 %v293
        %317 = vmatprep.subr.bf16.mxu0 %v292
        %318 = vmatpush1.bf16.msra.mxu0 %v291
        %319 = vmatprep.subr.bf16.mxu0 %v290
        %320 = vmatpush1.bf16.msra.mxu0 %v289
        %321 = vmatprep.subr.bf16.mxu0 %v288
        %322 = vmatpush1.bf16.msra.mxu0 %v287
        %323 = vmatprep.subr.bf16.mxu0 %v286
        %324 = vmatpush1.bf16.msra.mxu0 %v285
        %325 = vmatprep.subr.bf16.mxu0 %v284
        %326 = vmatpush1.bf16.msra.mxu0 %v283
        %327 = vmatprep.subr.bf16.mxu0 %v282
        %328 = vmatpush1.bf16.msra.mxu0 %v281
        %329 = vmatprep.subr.bf16.mxu0 0
        %330 = vmatpush2.bf16.msra.mxu0 0
        %331 = vmatprep.subr.bf16.mxu0 0
        %332 = vmatpush2.bf16.msra.mxu0 0
        %333 = vmatprep.subr.bf16.mxu0 0
        %334 = vmatpush2.bf16.msra.mxu0 0
        %335 = vmatprep.subr.bf16.mxu0 0
        %336 = vmatpush2.bf16.msra.mxu0 0
        %337 = vmatprep.subr.bf16.mxu0 0
        %338 = vmatpush2.bf16.msra.mxu0 0
        %339 = vmatprep.subr.bf16.mxu0 0
        %340 = vmatpush2.bf16.msra.mxu0 0
        %341 = vmatprep.subr.bf16.mxu0 0
        %342 = vmatpush2.bf16.msra.mxu0 0
        %343 = vmatprep.subr.bf16.mxu0 0
        %344 = vmatpush2.bf16.msra.mxu0 0
        %345 = vmatprep.mubr.bf16.mxu0 0
        %346 = vmatmul.mubr.bf16.gmra.mxu0 %v210
        %v347 = vpop.f32.mrf.mxu0
        %v348 = vadd.f32 %v231, %v347
        %v349 = vpop.f32.mrf.mxu0
        %v350 = vadd.f32 %v231, %v349
        %v351 = vpop.f32.mrf.mxu0
        %v352 = vpop.f32.mrf.mxu0
        %353 = vdwg.mxu0
        %354 = vst [vmem:[%s206] sm:$0xff] %v348
        %355 = vst [vmem:[%s206 + $0x8] sm:$0xff] %v350
        %s356 = sand.u32 %s112, 1
        %s357 = scalar_lea.sflag [#allocation4], %s356
        %s358 = sand.u32 %s112, 1
        %s359 = smul.addr %s358, 16
        %s360 = scalar_lea.vmem [#allocation5], %s359
        // Predicated region
        $region37: #{tpu_custom_call.1} parent=31 // pred_check
          %p361 = pneg %p122
        $region38: #{tpu_custom_call.1} parent=31 // pred_check_branch
          %363 = sbr.rel (%p361) target = $region40
        $region39: #{tpu_custom_call.1} parent=31 // pred_region
          %s364 = smul.u32 2, %s25
          %s366 = ssub.s32 256, 256
          %367 = vsyncadd %s357, %s366
          %s368 = smul.addr %s24, 2
          %s369 = sadd.s32 %s364, %s368
          %s370 = smul.addr %s369, 128
          %s371 = scalar_lea.hbm %s3, %s370
          %s373 = sshll.u32 %s360, 4
          %s374 = int_to_ptr.vmem [resolvable:$true] %s373
          %376 = dma.vmem_to_hbm [thread:$0]  %s374, 256, %s371, %s357
        $region40: #{tpu_custom_call.1} parent=31 // pred_fallthru
          _
      $region32: #{tpu_custom_call.1} parent=5 // pred_fallthru
        _
      %p377 = scmp.le.s32.totalorder 2, %s15
      // Predicated region
      $region41: #{tpu_custom_call.1} parent=5 // pred_check
        %p378 = pneg %p377
      $region42: #{tpu_custom_call.1} parent=5 // pred_check_branch
        %380 = sbr.rel (%p378) target = $region44
      $region43: #{tpu_custom_call.1} parent=5 // pred_region
        %s381 = ssub.s32 %s15, 2
        // Predicated region
        $region45: #{tpu_custom_call.1} parent=43 // pred_check
          %p382 = pneg %p128
        $region46: #{tpu_custom_call.1} parent=43 // pred_check_branch
          %384 = sbr.rel (%p382) target = $region48
        $region47: #{tpu_custom_call.1} parent=43 // pred_region
          %s385 = sand.u32 %s113, 1
          %s386 = scalar_lea.sflag [#allocation4], %s385
          %s387 = sand.u32 %s113, 1
          %s388 = smul.addr %s387, 16
          %s389 = scalar_lea.vmem [#allocation5], %s388
          %390 = dma.done %s386, 256
        $region48: #{tpu_custom_call.1} parent=43 // pred_fallthru
          _
      $region44: #{tpu_custom_call.1} parent=5 // pred_fallthru
        _
    $region6: #{tpu_custom_call.1} parent=1 // loop_footer
      %s19 = sadd.s32 1, %s15
    $region7: #{tpu_custom_call.1} parent=1 // loop_footer_branch
      %14 = sbr.rel target = $region3
    $region8: #{tpu_custom_call.1} parent=1 // loop_exit
      _
    %391 = vsyncpa [#allocation3], 1
    %s392 = scalar_lea.sflag [#allocation3], 1
    %393 = vsyncpa %s392, 1
    %394 = vsyncpa [#allocation4], 1
    %s395 = scalar_lea.sflag [#allocation4], 1
    %396 = vsyncpa %s395, 1

</llo_original>
